<compile_context>
chip_gen: v5e
topology: v5e:2x2
jax: 0.10.0
libtpu: 0.0.40
codegen_flags: <defaults>
</compile_context>

<pallas_src>
import functools

import jax
import jax.numpy as jnp
import numpy as np
from jax.experimental import pallas as pl
from jax.experimental.pallas import tpu as pltpu


_LANE = 128  # TPU lane width; time tiles are kept lane-aligned.


def _norm_tile_t(tile_t: int) -> int:
    """Clamp a requested time-tile length to a lane-aligned value >= 128."""
    return max(_LANE, (int(tile_t) // _LANE) * _LANE)


def _tile_len(T: int, tile_t: int) -> int:
    """Lane-aligned tile length that never exceeds the (padded) time extent.

    Keeping tile <= floor(T/128)*128 (or 128 for tiny, padded T) guarantees
    every block starts in-bounds; only the last block can be ragged, which
    Pallas handles by clamping the DMA and dropping out-of-bounds writes.
    """
    t_floor = max(_LANE, (T // _LANE) * _LANE)
    return min(_norm_tile_t(tile_t), t_floor)


def _greedy_ctc_kernel(em_ref, out_ref, *, blank: int):
    """One time-tile of greedy CTC decoding.

    em_ref:  (C, TT)  emission scores (classes on sublanes, time on lanes)
    out_ref: (1, TT)  int8 packed result:
                        kept token    -> argmax index      (0 .. C-1, >= 0)
                        dropped token -> argmax index - 128 (< 0, recoverable)
    The tile's first timestep is treated as having no predecessor; the host
    fixes up the <= num_tiles-1 tile-boundary tokens, so there is no carried
    state and the grid axis is fully parallel.
    """
    x = em_ref[...]                                                  # (C, TT)
    C, TT = x.shape

    # argmax over classes (sublane reduction); first occurrence on ties,
    # matching torch.argmax.
    max_val = jnp.max(x, axis=0, keepdims=True)                      # (1, TT)
    row = jax.lax.broadcasted_iota(jnp.int32, (C, TT), 0)            # (C, TT)
    cand = jnp.where(x == max_val, row, jnp.int32(C))                # (C, TT)
    idx = jnp.min(cand, axis=0, keepdims=True)                       # (1, TT)

    # prev[t] = idx[t-1] within the tile (cheap XLU lane roll); the tile's
    # first lane has no predecessor (-1 == "always different").
    lane = jax.lax.broadcasted_iota(jnp.int32, (1, TT), 1)           # (1, TT)
    prev = pltpu.roll(idx, shift=1, axis=1)
    prev = jnp.where(lane == 0, jnp.int32(-1), prev)

    keep = jnp.logical_and(idx != prev, idx != jnp.int32(blank))
    out_ref[...] = jnp.where(keep, idx, idx - 128).astype(jnp.int8)


@functools.partial(jax.jit, static_argnames=("blank", "tile_t", "classes_first"))
def greedy_ctc_packed(emission: jax.Array, blank: int = 0, tile_t: int = 16384,
                      classes_first: bool = False) -> jax.Array:
    """Greedy CTC decode (argmax + unique_consecutive + blank drop), packed.

    emission: (T, C) float scores (torch layout), or (C, T) when
              classes_first=True (skips the wrapper transpose entirely).
    Returns an int8 array of shape (1, max(T, 128)):
        value >= 0 -> kept token index
        value <  0 -> dropped; raw argmax index = value + 128
    Only the first T columns are meaningful; slice on the host.
    """
    if classes_first:
        C, T = emission.shape
        em_t = emission
    else:
        T, C = emission.shape
        # TODO(synk): single fused XLA relayout; emit (C, T) upstream
        # (classes_first=True) or batch utterances to amortise it.
        em_t = emission.T
    if C > 127:
        raise ValueError("int8 packing requires C <= 127 classes")

    # Tiny utterances: pad time up to one lane group so every block is
    # lane-aligned; padded columns are discarded by the host slice.
    if T < _LANE:
        em_t = jnp.pad(em_t, ((0, 0), (0, _LANE - T)))
    t_in = max(T, _LANE)

    tile = _tile_len(T, tile_t)
    num_tiles = pl.cdiv(t_in, tile)

    # (C, tile) blocks: C=32 f32 -> 2 MiB/buffer at tile=16384, comfortably
    # inside the default scoped-VMEM limit on every generation; raise
    # vmem_limit_bytes only if pushing tile_t >= 32768 (v7x).
    return pl.pallas_call(
        functools.partial(_greedy_ctc_kernel, blank=blank),
        out_shape=jax.ShapeDtypeStruct((1, t_in), jnp.int8),
        grid=(num_tiles,),
        in_specs=[pl.BlockSpec((C, tile), lambda i: (0, i))],
        out_specs=pl.BlockSpec((1, tile), lambda i: (0, i)),
        compiler_params=pltpu.CompilerParams(
            # No cross-tile carry -> time tiles shard across TensorCores (v7x).
            dimension_semantics=("parallel",)),
    )(em_t)


class GreedyCTCDecoder:
    """JAX/Pallas port of the PyTorch GreedyCTCDecoder."""

    def __init__(self, labels, blank: int = 0):
        self.labels = labels
        self.blank = blank

    def __call__(self, emission: jax.Array, tile_t: int = 16384,
                 classes_first: bool = False) -> str:
        T = emission.shape[1] if classes_first else emission.shape[0]
        packed = greedy_ctc_packed(emission, blank=self.blank, tile_t=tile_t,
                                   classes_first=classes_first)
        # Single small D2H copy (~T bytes); all filtering on the host.
        v = np.asarray(jax.block_until_ready(packed))[0, :T].astype(np.int32)
        raw = np.where(v < 0, v + 128, v)          # recover raw argmax indices
        kept = v >= 0
        # Fix up the <= num_tiles-1 tile-boundary tokens (kernel has no
        # cross-tile previous index).
        tile = _tile_len(T, tile_t)
        for b in range(tile, T, tile):
            if kept[b] and raw[b] == raw[b - 1]:
                kept[b] = False
        # host-side glue: join label characters (no tensor math)
        return ''.join(self.labels[int(i)] for i in raw[kept])


def _reference_decode(emission_np: np.ndarray, labels, blank: int = 0) -> str:
    """Pure-NumPy reference matching the torch module's semantics."""
    idx = np.asarray(emission_np).argmax(axis=-1)
    out, prev = [], None
    for i in idx.tolist():
        if i != prev and i != blank:
            out.append(i)
        prev = i
    return ''.join(labels[i] for i in out)


if __name__ == "__main__":
    C = 32
    # 32 labels; label 0 ('-') is the CTC blank.
    labels = ['-', '|'] + [chr(ord('a') + i) for i in range(26)] + list(".,'?")
    assert len(labels) == C
    decoder = GreedyCTCDecoder(labels, blank=0)

    key = jax.random.PRNGKey(0)
    k1, k2, k3 = jax.random.split(key, 3)

    # 1) Tiny utterance (T=16 < 128): padded single-tile path.
    em1 = jax.random.normal(k1, (16, C), dtype=jnp.float32)
    out1 = decoder(em1)
    ref1 = _reference_decode(np.asarray(em1), labels, blank=0)
    assert out1 == ref1, (out1, ref1)

    # 2) Multi-tile path with ragged last block and host boundary fixups
    #    (T=300, tile_t=128 -> 3 independent/parallel tiles).
    em2 = jax.random.normal(k2, (300, C), dtype=jnp.float32)
    out2 = decoder(em2, tile_t=128)
    ref2 = _reference_decode(np.asarray(em2), labels, blank=0)
    assert out2 == ref2, (out2, ref2)

    # 3) bf16 emissions (halves HBM traffic; kernel does comparisons only).
    em3 = jax.random.normal(k3, (300, C), dtype=jnp.bfloat16)
    out3 = decoder(em3)
    ref3 = _reference_decode(np.asarray(em3.astype(jnp.float32)), labels, blank=0)
    assert out3 == ref3, (out3, ref3)

    # 4) Pre-transposed (C, T) input: no wrapper transpose at all.
    out4 = decoder(jnp.asarray(em2).T, classes_first=True)
    assert out4 == ref2, (out4, ref2)

    print("KERNEL_OK")
</pallas_src>

<mosaic_0001>
module attributes {stable_mosaic.version = 11 : i64} {
  func.func @_greedy_ctc_kernel(%arg0: i32, %arg1: memref<32x128xf32, #tpu.memory_space<vmem>>, %arg2: memref<1x128xi8, #tpu.memory_space<vmem>>) attributes {dimension_semantics = [#tpu.dimension_semantics<parallel>], iteration_bounds = array<i64: 1>, scalar_prefetch = 0 : i64, scratch_operands = 0 : i64, tpu.core_type = #tpu.core_type<tc>, window_params = [{transform_indices = @transform_0, window_bounds = array<i64: 32, 128>}, {transform_indices = @transform_1, window_bounds = array<i64: 1, 128>}]} {
    %c0 = arith.constant 0 : index
    %c0_0 = arith.constant 0 : index
    %0 = vector.load %arg1[%c0, %c0_0] : memref<32x128xf32, #tpu.memory_space<vmem>>, vector<32x128xf32>
    %cst = arith.constant dense<0xFF800000> : vector<128xf32>
    %1 = vector.multi_reduction <maximumf>, %0, %cst [0] : vector<32x128xf32> to vector<128xf32>
    %2 = vector.shape_cast %1 : vector<128xf32> to vector<1x128xf32>
    %3 = tpu.iota {dimensions = array<i32: 0>} : vector<32x128xi32>
    %4 = vector.broadcast %2 : vector<1x128xf32> to vector<32x128xf32>
    %5 = arith.cmpf oeq, %0, %4 : vector<32x128xf32>
    %c32_i32 = arith.constant 32 : i32
    %6 = vector.broadcast %c32_i32 : i32 to vector<32x128xi32>
    %7 = arith.select %5, %3, %6 : vector<32x128xi1>, vector<32x128xi32>
    %cst_1 = arith.constant dense<2147483647> : vector<128xi32>
    %8 = vector.multi_reduction <minsi>, %7, %cst_1 [0] : vector<32x128xi32> to vector<128xi32>
    %9 = vector.shape_cast %8 : vector<128xi32> to vector<1x128xi32>
    %10 = tpu.iota {dimensions = array<i32: 1>} : vector<1x128xi32>
    %c1_i32 = arith.constant 1 : i32
    %11 = tpu.dynamic_rotate %9 by %c1_i32 dim 1 : vector<1x128xi32>, i32 -> vector<1x128xi32>
    %c0_i32 = arith.constant 0 : i32
    %12 = vector.broadcast %c0_i32 : i32 to vector<1x128xi32>
    %13 = arith.cmpi eq, %10, %12 : vector<1x128xi32>
    %c-1_i32 = arith.constant -1 : i32
    %14 = vector.broadcast %c-1_i32 : i32 to vector<1x128xi32>
    %15 = arith.select %13, %14, %11 : vector<1x128xi1>, vector<1x128xi32>
    %16 = arith.cmpi ne, %9, %15 : vector<1x128xi32>
    %c0_i32_2 = arith.constant 0 : i32
    %17 = vector.broadcast %c0_i32_2 : i32 to vector<1x128xi32>
    %18 = arith.cmpi ne, %9, %17 : vector<1x128xi32>
    %19 = arith.andi %16, %18 : vector<1x128xi1>
    %c128_i32 = arith.constant 128 : i32
    %20 = vector.broadcast %c128_i32 : i32 to vector<1x128xi32>
    %21 = arith.subi %9, %20 : vector<1x128xi32>
    %22 = arith.select %19, %9, %21 : vector<1x128xi1>, vector<1x128xi32>
    %23 = arith.trunci %22 : vector<1x128xi32> to vector<1x128xi8>
    %c0_3 = arith.constant 0 : index
    %c0_4 = arith.constant 0 : index
    %24 = vector.load %arg2[%c0_3, %c0_4] : memref<1x128xi8, #tpu.memory_space<vmem>>, vector<1x128xi8>
    tpu.vector_store %arg2[%c0_3, %c0_4], %23 {strides = array<i32>} : memref<1x128xi8, #tpu.memory_space<vmem>>, vector<1x128xi8>,
    return
  }
  func.func @transform_0(%arg0: i32) -> (i32, i32) {
    %c0_i32 = arith.constant 0 : i32
    %c0_i32_0 = arith.constant 0 : i32
    return %c0_i32, %arg0 : i32, i32
  }
  func.func @transform_1(%arg0: i32) -> (i32, i32) {
    %c0_i32 = arith.constant 0 : i32
    %c0_i32_0 = arith.constant 0 : i32
    return %c0_i32, %arg0 : i32, i32
  }
}

</mosaic_0001>

<llo_original>
// kernel: greedy_ctc_packed.1
$region0: #{greedy_ctc_packed.1}
  #allocation0 [shape = 'u32[]', space=smem, size = 0x4, offset = 0x4, fixed_abs, tag = 'smem constant byte address 0x4 - core index']
  #allocation1 [shape = 'u32[72,128]{1,0:T(1,128)}', space=vmem, size = 0x9000, scoped, tag = 'internal scratch']
  %s0 = inlined_call_operand.vmem [shape: f32[32,128], index: 0, kind: input, shape index: {}]
  %s1 = inlined_call_operand.hbm [shape: s8[1,128], index: 1, kind: output, shape index: {}]
  %s2 = sld [smem:[#allocation0]]
  $region14: #{greedy_ctc_packed.1} parent=0
    _
  %s4 = ssub.s32 1, %s2
  %s5 = scalar_select 0, %s4, %s2
  $region1: #{greedy_ctc_packed.1} parent=0
    #allocation2 [shape = 'u8[512]{0}', space=vmem, size = 0x400, scoped, tag = 'output window, operand 0, single buffered']
    #allocation3 [shape = 's32[1]{0}', space=sflag, size = 0x4, scoped, tag = 'scoped memory for greedy_ctc_packed.1']
    %6 = vsyncpa [#allocation3], 0
    // Predicated region
    $region2: #{greedy_ctc_packed.1} parent=1 // pred_check
      _
    $region3: #{greedy_ctc_packed.1} parent=1 // pred_check_branch
      %8 = sbr.rel (0) target = $region5
    $region4: #{greedy_ctc_packed.1} parent=1 // pred_region
      _
    $region5: #{greedy_ctc_packed.1} parent=1 // pred_fallthru
      _
    %v9 = vld [vmem:[%s0] sm:$0xff]
    %v10 = vld [vmem:[%s0 + $0x8] sm:$0xff]
    %v11 = vld [vmem:[%s0 + $0x10] sm:$0xff]
    %v12 = vld [vmem:[%s0 + $0x18] sm:$0xff]
    %v13 = vmax.f32 %v9, %v10
    %v14 = vmax.f32 %v11, %v12
    %v15 = vmax.f32 %v13, %v14
    %v16 = vrot.slane %v15, 4
    %v17 = vmax.f32 %v15, %v16
    %v18 = vrot.slane %v17, 2
    %v19 = vmax.f32 %v17, %v18
    %v20 = vrot.slane %v19, 1
    %v21 = vmax.f32 %v19, %v20
    %v22 = vlaneseq
    %v23 = vshrl.u32 %v22, 7
    %v24 = vadd.s32 %v23, 8
    %v25 = vadd.s32 %v23, 16
    %v26 = vadd.s32 %v23, 24
    %vm27 = vcmp.eq.f32.partialorder %v9, %v21
    %vm28 = vcmp.eq.f32.partialorder %v10, %v21
    %vm29 = vcmp.eq.f32.partialorder %v11, %v21
    %vm30 = vcmp.eq.f32.partialorder %v12, %v21
    %v31 = vsel %vm27, %v23, 32
    %v32 = vsel %vm28, %v24, 32
    %v33 = vsel %vm29, %v25, 32
    %v34 = vsel %vm30, %v26, 32
    %vm35 = vcmp.lt.s32.totalorder %v31, %v32
    %v36 = vsel %vm35, %v31, %v32
    %vm37 = vcmp.lt.s32.totalorder %v33, %v34
    %v38 = vsel %vm37, %v33, %v34
    %vm39 = vcmp.lt.s32.totalorder %v36, %v38
    %v40 = vsel %vm39, %v36, %v38
    %v41 = vrot.slane %v40, 4
    %vm42 = vcmp.lt.s32.totalorder %v40, %v41
    %v43 = vsel %vm42, %v40, %v41
    %v44 = vrot.slane %v43, 2
    %vm45 = vcmp.lt.s32.totalorder %v43, %v44
    %v46 = vsel %vm45, %v43, %v44
    %v47 = vrot.slane %v46, 1
    %vm48 = vcmp.lt.s32.totalorder %v46, %v47
    %v49 = vsel %vm48, %v46, %v47
    %v50 = vlaneseq
    %v51 = vand.u32 %v50, 127
    %52 = vrot.lane.b32.xlu0 %v49, 1
    %v53 = vpop.permute.xlu0 %52
    %vm54 = vcmp.eq.s32.totalorder %v51, 0
    %v55 = vsel %vm54, 4294967295, %v53
    %vm56 = vcmp.ne.s32.totalorder %v49, %v55
    %vm57 = vcmp.ne.s32.totalorder %v49, 0
    %vm58 = vmand %vm56, %vm57
    %v59 = vsub.s32 %v49, 128
    %v60 = vsel %vm58, %v49, %v59
    %v61 = vpack.c.b16 %v60, %v60
    %v62 = vpack.c.b8 %v61, %v61
    %vm63 = vcmask 1040384
    %vm64 = vsmask.f32 0
    %vm65 = vmand %vm63, %vm64
    %v66 = vld [vmem:[#allocation2] sm:$0x1]
    %v67 = vsel %vm65, %v62, %v66
    %68 = vst [vmem:[#allocation2] sm:$0x1] %v67
    // Predicated region
    $region6: #{greedy_ctc_packed.1} parent=1 // pred_check
      _
    $region7: #{greedy_ctc_packed.1} parent=1 // pred_check_branch
      %70 = sbr.rel (0) target = $region9
    $region8: #{greedy_ctc_packed.1} parent=1 // pred_region
      %72 = vsyncadd [#allocation3], 0
      %s74 = sshll.u32 [#allocation2], 4
      %s75 = int_to_ptr.vmem [resolvable:$true] %s74
      %s76 = sshll.u32 %s1, 4
      %s77 = int_to_ptr.hbm [resolvable:$true] %s76
      %79 = dma.vmem_to_hbm [thread:$0]  %s75, 16, %s77, [#allocation3]
    $region9: #{greedy_ctc_packed.1} parent=1 // pred_fallthru
      _
    // Predicated region
    $region10: #{greedy_ctc_packed.1} parent=1 // pred_check
      _
    $region11: #{greedy_ctc_packed.1} parent=1 // pred_check_branch
      %81 = sbr.rel (0) target = $region13
    $region12: #{greedy_ctc_packed.1} parent=1 // pred_region
      %83 = dma.done [#allocation3], 16
    $region13: #{greedy_ctc_packed.1} parent=1 // pred_fallthru
      _
    %84 = vsyncpa [#allocation3], 1

</llo_original>
